<compile_context>
chip_gen: v5e
topology: v5e:2x2
jax: 0.10.0
libtpu: 0.0.40
codegen_flags: <defaults>
</compile_context>

<pallas_src>
import functools

import jax
import jax.numpy as jnp
from jax import lax
from jax.experimental import pallas as pl
from jax.experimental.pallas import tpu as pltpu

LANES = 128               # packed / padded lane width (full vreg lane dim)
_MIB = 1 << 20
_VMEM_BUDGET = 40 * _MIB  # conservative working-set target (fits v7x's 64 MiB physical)


# --------------------------------------------------------------------------- kernels
def _stage1_kernel(h_ref, g_ref, w2p_ref, b2p_ref, x30_ref, y_ref):
    """x_30 row block + fused Y = x_30 @ w2 + b2 row block.

    H (resident broadcast, prop dtype) is the hoisted packed affine transform:
      cols  0:30   -> x[:, 0:30] @ wh + bh       (branch 1)
      cols 30:60   -> x[:,30:60] @ wh + bh       (branch 2)
      cols 64:94   -> x          @ w1 + b1       (branch 3)
      cols 98:128  -> duplicate of branch 2      (makes the rolls sign-agnostic)
    """
    # Dominant matmul: this grid step's G row stripe times the resident packed H.
    p = jnp.dot(g_ref[...], h_ref[...], preferred_element_type=jnp.float32)
    r = jnp.maximum(p, 0.0)                       # relu on the full 128-wide tile

    # Bring branch-2 and branch-3 lanes down to 0:30 via XLU rolls (free slot).
    # roll by 98 (== -30 mod 128) hits cols 30:60 or the 98:128 duplicate depending
    # on sign convention; roll by 64 is self-inverse, so cols 64:94 land at 0:30
    # either way.  Then one full-width mul-add + lane mask.
    r2 = pltpu.roll(r, LANES - 30, 1)
    r3 = pltpu.roll(r, 64, 1)
    col = lax.broadcasted_iota(jnp.int32, r.shape, 1)
    x_mid = jnp.where(col < 30, r * r2 + r3, 0.0)  # (block, 128), lanes >= 30 zeroed

    x30_ref[...] = x_mid                           # lane-dense full-width store (f32)

    # Fused stage-2 affine (done once per row block, never recomputed in stage 2):
    y = jnp.dot(x_mid, w2p_ref[...], preferred_element_type=jnp.float32) + b2p_ref[...]
    y_ref[...] = y.astype(y_ref.dtype)             # lane-dense store in prop dtype


def _stage2_kernel(y_ref, g_ref, out_ref):
    """out row block = G_rowblock @ Y (Y already holds x_30 @ w2 + b2)."""
    out_ref[...] = jnp.dot(g_ref[...], y_ref[...], preferred_element_type=jnp.float32)


# --------------------------------------------------------------------------- tiling
def _round_up(n, m):
    return ((n + m - 1) // m) * m


def _vmem_estimate(block, np_rows, g_item, h_item):
    g_stripe = 2 * block * np_rows * g_item            # double-buffered G row stripe
    slab = 2 * np_rows * LANES * h_item                # resident broadcast H / Y slab
    outs = 2 * block * LANES * (4 + h_item)            # x30 (f32) + y output buffers
    consts = LANES * LANES * 4 + LANES * 4              # w2p / b2p
    return g_stripe + slab + outs + consts


def _plan_tiling(n_rows, g_item, h_item):
    """Pick (padded_rows, block_rows): largest row block that fits the VMEM budget."""
    if n_rows <= 256:
        np_rows = _round_up(n_rows, 8)
        return np_rows, np_rows                         # single grid step (v5e/v6e small-N)
    np_rows = _round_up(n_rows, LANES)
    block = LANES
    for cand in (2048, 1024, 512, 256, 128):
        if np_rows % cand == 0 and _vmem_estimate(cand, np_rows, g_item, h_item) <= _VMEM_BUDGET:
            block = cand
            break
    # v7x megacore: prefer an even number of row blocks when it costs nothing.
    steps = np_rows // block
    if steps > 1 and steps % 2 == 1 and block > LANES:
        block //= 2
    return np_rows, block


# --------------------------------------------------------------------------- wrapper
def prepare_graph(G):
    """Cast G to bf16 ONCE per graph (G is the dominant, reused HBM operand)."""
    return G.astype(jnp.bfloat16)


@functools.partial(jax.jit, static_argnames=("block_rows",))
def hgnn_forward(x, G, wh, bh, w1, b1, w2, b2, *, block_rows=None):
    N, in_ch = x.shape
    assert in_ch == 60, "HGNN forward slices x into [:, :30] / [:, 30:60]"
    n_hid = w1.shape[1]
    n_class = w2.shape[1]
    assert n_hid == 30, "x1 * x2 + x3 requires n_hid == 30"
    assert n_class <= LANES

    f32 = jnp.float32
    # Use G's stored dtype for the two propagations (pass a prepare_graph() result
    # for bf16); no per-call up/down cast of G unless it is an unsupported dtype.
    prop_dtype = jnp.bfloat16 if G.dtype == jnp.bfloat16 else f32
    g_item = jnp.dtype(prop_dtype).itemsize
    h_item = g_item

    np_rows, blk = _plan_tiling(N, g_item, h_item)
    if block_rows is not None:
        blk = block_rows
        np_rows = _round_up(N, blk)
    grid = (np_rows // blk,)

    if G.dtype != prop_dtype:
        G = G.astype(prop_dtype)
    if np_rows != N:
        # Exact: padded G rows/cols are zero, padded output rows are sliced away.
        G = jnp.pad(G, ((0, np_rows - N), (0, np_rows - N)))
        x = jnp.pad(x.astype(f32), ((0, np_rows - N), (0, 0)))
    else:
        x = x.astype(f32)

    wh = wh.astype(f32)
    w1 = w1.astype(f32)
    w2 = w2.astype(f32)
    bh = bh.astype(f32).reshape(1, 30)
    b1 = b1.astype(f32).reshape(1, n_hid)
    b2 = b2.astype(f32).reshape(1, n_class)

    # ---- packed stage-1 weights (block-diagonal; branch-2 duplicated at 98:128)
    wc = jnp.zeros((60, LANES), f32)
    wc = wc.at[0:30, 0:30].set(wh)
    wc = wc.at[30:60, 30:60].set(wh)
    wc = wc.at[:, 64:94].set(w1)
    wc = wc.at[30:60, 98:128].set(wh)
    bc = jnp.zeros((1, LANES), f32)
    bc = bc.at[:, 0:30].set(bh).at[:, 30:60].set(bh).at[:, 64:94].set(b1).at[:, 98:128].set(bh)

    # ---- HOISTED prologue: packed affine transform computed once, not per grid step.
    h_slab = (x @ wc + bc).astype(prop_dtype)            # (np_rows, 128)

    # ---- packed stage-2 weights (128-lane dense, zero padded -> exact)
    w2p = jnp.zeros((LANES, LANES), f32).at[0:n_hid, 0:n_class].set(w2)
    b2p = jnp.zeros((1, LANES), f32).at[:, 0:n_class].set(b2)

    est = _vmem_estimate(blk, np_rows, g_item, h_item)
    vmem_limit = int(min(max(est * 5 // 4 + 2 * _MIB, 32 * _MIB), 50 * _MIB))
    cparams = pltpu.CompilerParams(
        dimension_semantics=("parallel",),
        vmem_limit_bytes=vmem_limit,
    )

    def bcast(shape):
        return pl.BlockSpec(shape, lambda i: (0, 0))

    def row_block(width):
        return pl.BlockSpec((blk, width), lambda i: (i, 0))

    # Stage 1: x_30 slab (f32) + fused Y slab (prop dtype), row-tiled over G.
    x30_slab, y_slab = pl.pallas_call(
        _stage1_kernel,
        out_shape=(
            jax.ShapeDtypeStruct((np_rows, LANES), f32),
            jax.ShapeDtypeStruct((np_rows, LANES), prop_dtype),
        ),
        grid=grid,
        in_specs=[
            bcast((np_rows, LANES)),    # H (resident broadcast, hoisted prologue)
            row_block(np_rows),         # G row stripe
            bcast((LANES, LANES)),      # padded w2
            bcast((1, LANES)),          # padded b2
        ],
        out_specs=(row_block(LANES), row_block(LANES)),
        compiler_params=cparams,
    )(h_slab, G, w2p, b2p)

    # Stage 2 (separate call: the propagation needs the FULL Y slab).
    out_slab = pl.pallas_call(
        _stage2_kernel,
        out_shape=jax.ShapeDtypeStruct((np_rows, LANES), f32),
        grid=grid,
        in_specs=[
            bcast((np_rows, LANES)),    # Y (resident broadcast)
            row_block(np_rows),         # G row stripe
        ],
        out_specs=row_block(LANES),
        compiler_params=cparams,
    )(y_slab, G)

    # Slice the lane-dense slabs back to the module's logical shapes.
    return out_slab[:N, :n_class], x30_slab[:N, :n_hid]


# --------------------------------------------------------------------------- reference
def reference_forward(x, G, wh, bh, w1, b1, w2, b2):
    def hgc(xin, w, b):
        return G @ (xin @ w + b)

    x1 = jax.nn.relu(hgc(x[:, 0:30], wh, bh))
    x2 = jax.nn.relu(hgc(x[:, 30:60], wh, bh))
    x3 = jax.nn.relu(hgc(x, w1, b1))
    x_30 = x1 * x2 + x3
    return hgc(x_30, w2, b2), x_30


if __name__ == "__main__":
    N = 64          # number of nodes
    in_ch = 60
    n_hid = 30
    n_class = 8

    key = jax.random.PRNGKey(0)
    kx, kg, k1, k2, k3, k4, k5, k6 = jax.random.split(key, 8)

    x = jax.random.normal(kx, (N, in_ch), dtype=jnp.float32)
    G = jax.random.normal(kg, (N, N), dtype=jnp.float32) / jnp.sqrt(N)

    # Deterministic parameter init (shapes follow HGNN_conv(in_ft, out_ft)).
    wh = jax.random.normal(k1, (30, 30), dtype=jnp.float32) * 0.1       # hgc_half
    bh = jax.random.normal(k2, (1, 30), dtype=jnp.float32) * 0.1
    w1 = jax.random.normal(k3, (60, n_hid), dtype=jnp.float32) * 0.1    # hgc1
    b1 = jax.random.normal(k4, (1, n_hid), dtype=jnp.float32) * 0.1
    w2 = jax.random.normal(k5, (n_hid, n_class), dtype=jnp.float32) * 0.1  # hgc2
    b2 = jax.random.normal(k6, (1, n_class), dtype=jnp.float32) * 0.1

    g16 = prepare_graph(G)   # one-time per-graph bf16 cast (amortized across calls)

    out, x_30 = hgnn_forward(x, g16, wh, bh, w1, b1, w2, b2)
    jax.block_until_ready((out, x_30))

    ref_out, ref_x30 = reference_forward(x, G, wh, bh, w1, b1, w2, b2)
    assert out.shape == (N, n_class) and x_30.shape == (N, n_hid)
    # Relaxed tolerance: both G-propagations use bf16 operands (f32 accumulation).
    assert jnp.allclose(out, ref_out, atol=5e-2, rtol=5e-2)
    assert jnp.allclose(x_30, ref_x30, atol=5e-2, rtol=5e-2)

    print("KERNEL_OK")
</pallas_src>

<mosaic_0001>
module attributes {stable_mosaic.version = 11 : i64} {
  func.func @_stage1_kernel(%arg0: i32, %arg1: memref<64x128xbf16, #tpu.memory_space<vmem>>, %arg2: memref<64x64xbf16, #tpu.memory_space<vmem>>, %arg3: memref<128x128xf32, #tpu.memory_space<vmem>>, %arg4: memref<1x128xf32, #tpu.memory_space<vmem>>, %arg5: memref<64x128xf32, #tpu.memory_space<vmem>>, %arg6: memref<64x128xbf16, #tpu.memory_space<vmem>>) attributes {dimension_semantics = [#tpu.dimension_semantics<parallel>], iteration_bounds = array<i64: 1>, scalar_prefetch = 0 : i64, scratch_operands = 0 : i64, tpu.core_type = #tpu.core_type<tc>, window_params = [{pipeline_mode = #tpu.pipeline_mode<synchronous>, transform_indices = @transform_0, window_bounds = array<i64: 64, 128>}, {transform_indices = @transform_1, window_bounds = array<i64: 64, 64>}, {pipeline_mode = #tpu.pipeline_mode<synchronous>, transform_indices = @transform_2, window_bounds = array<i64: 128, 128>}, {pipeline_mode = #tpu.pipeline_mode<synchronous>, transform_indices = @transform_3, window_bounds = array<i64: 1, 128>}, {transform_indices = @transform_4, window_bounds = array<i64: 64, 128>}, {transform_indices = @transform_5, window_bounds = array<i64: 64, 128>}]} {
    %c0 = arith.constant 0 : index
    %c0_0 = arith.constant 0 : index
    %0 = vector.load %arg2[%c0, %c0_0] : memref<64x64xbf16, #tpu.memory_space<vmem>>, vector<64x64xbf16>
    %c0_1 = arith.constant 0 : index
    %c0_2 = arith.constant 0 : index
    %1 = vector.load %arg1[%c0_1, %c0_2] : memref<64x128xbf16, #tpu.memory_space<vmem>>, vector<64x128xbf16>
    %cst = arith.constant dense<0.000000e+00> : vector<64x128xf32>
    %2 = tpu.matmul %0, %1, %cst {dimension_numbers = #tpu.dot_dimension_numbers<[1], [0], [0], [1], [0, 0, 1, 1], [], []>} : vector<64x64xbf16>, vector<64x128xbf16>, vector<64x128xf32> -> vector<64x128xf32>
    %cst_3 = arith.constant 0.000000e+00 : f32
    %3 = vector.broadcast %cst_3 : f32 to vector<64x128xf32>
    %4 = arith.maximumf %2, %3 : vector<64x128xf32>
    %c98_i32 = arith.constant 98 : i32
    %5 = tpu.dynamic_rotate %4 by %c98_i32 dim 1 : vector<64x128xf32>, i32 -> vector<64x128xf32>
    %c64_i32 = arith.constant 64 : i32
    %6 = tpu.dynamic_rotate %4 by %c64_i32 dim 1 : vector<64x128xf32>, i32 -> vector<64x128xf32>
    %7 = tpu.iota {dimensions = array<i32: 1>} : vector<64x128xi32>
    %c30_i32 = arith.constant 30 : i32
    %8 = vector.broadcast %c30_i32 : i32 to vector<64x128xi32>
    %9 = arith.cmpi slt, %7, %8 : vector<64x128xi32>
    %10 = arith.mulf %4, %5 : vector<64x128xf32>
    %11 = arith.addf %10, %6 : vector<64x128xf32>
    %cst_4 = arith.constant 0.000000e+00 : f32
    %12 = vector.broadcast %cst_4 : f32 to vector<64x128xf32>
    %13 = arith.select %9, %11, %12 : vector<64x128xi1>, vector<64x128xf32>
    %c0_5 = arith.constant 0 : index
    %c0_6 = arith.constant 0 : index
    %14 = vector.load %arg5[%c0_5, %c0_6] : memref<64x128xf32, #tpu.memory_space<vmem>>, vector<64x128xf32>
    tpu.vector_store %arg5[%c0_5, %c0_6], %13 {strides = array<i32>} : memref<64x128xf32, #tpu.memory_space<vmem>>, vector<64x128xf32>,
    %c0_7 = arith.constant 0 : index
    %c0_8 = arith.constant 0 : index
    %15 = vector.load %arg3[%c0_7, %c0_8] : memref<128x128xf32, #tpu.memory_space<vmem>>, vector<128x128xf32>
    %cst_9 = arith.constant dense<0.000000e+00> : vector<64x128xf32>
    %16 = tpu.matmul %13, %15, %cst_9 {dimension_numbers = #tpu.dot_dimension_numbers<[1], [0], [0], [1], [0, 0, 1, 1], [], []>} : vector<64x128xf32>, vector<128x128xf32>, vector<64x128xf32> -> vector<64x128xf32>
    %c0_10 = arith.constant 0 : index
    %c0_11 = arith.constant 0 : index
    %17 = vector.load %arg4[%c0_10, %c0_11] : memref<1x128xf32, #tpu.memory_space<vmem>>, vector<1x128xf32>
    %18 = vector.broadcast %17 : vector<1x128xf32> to vector<64x128xf32>
    %19 = arith.addf %16, %18 : vector<64x128xf32>
    %20 = arith.truncf %19 : vector<64x128xf32> to vector<64x128xbf16>
    %c0_12 = arith.constant 0 : index
    %c0_13 = arith.constant 0 : index
    %21 = vector.load %arg6[%c0_12, %c0_13] : memref<64x128xbf16, #tpu.memory_space<vmem>>, vector<64x128xbf16>
    tpu.vector_store %arg6[%c0_12, %c0_13], %20 {strides = array<i32>} : memref<64x128xbf16, #tpu.memory_space<vmem>>, vector<64x128xbf16>,
    return
  }
  func.func @transform_0(%arg0: i32) -> (i32, i32) {
    %c0_i32 = arith.constant 0 : i32
    %c0_i32_0 = arith.constant 0 : i32
    %c0_i32_1 = arith.constant 0 : i32
    return %c0_i32, %c0_i32_0 : i32, i32
  }
  func.func @transform_1(%arg0: i32) -> (i32, i32) {
    %c0_i32 = arith.constant 0 : i32
    %c0_i32_0 = arith.constant 0 : i32
    return %arg0, %c0_i32 : i32, i32
  }
  func.func @transform_2(%arg0: i32) -> (i32, i32) {
    %c0_i32 = arith.constant 0 : i32
    %c0_i32_0 = arith.constant 0 : i32
    %c0_i32_1 = arith.constant 0 : i32
    return %c0_i32, %c0_i32_0 : i32, i32
  }
  func.func @transform_3(%arg0: i32) -> (i32, i32) {
    %c0_i32 = arith.constant 0 : i32
    %c0_i32_0 = arith.constant 0 : i32
    %c0_i32_1 = arith.constant 0 : i32
    return %c0_i32, %c0_i32_0 : i32, i32
  }
  func.func @transform_4(%arg0: i32) -> (i32, i32) {
    %c0_i32 = arith.constant 0 : i32
    %c0_i32_0 = arith.constant 0 : i32
    return %arg0, %c0_i32 : i32, i32
  }
  func.func @transform_5(%arg0: i32) -> (i32, i32) {
    %c0_i32 = arith.constant 0 : i32
    %c0_i32_0 = arith.constant 0 : i32
    return %arg0, %c0_i32 : i32, i32
  }
}

module attributes {stable_mosaic.version = 11 : i64} {
  func.func @_stage2_kernel(%arg0: i32, %arg1: memref<64x128xbf16, #tpu.memory_space<vmem>>, %arg2: memref<64x64xbf16, #tpu.memory_space<vmem>>, %arg3: memref<64x128xf32, #tpu.memory_space<vmem>>) attributes {dimension_semantics = [#tpu.dimension_semantics<parallel>], iteration_bounds = array<i64: 1>, scalar_prefetch = 0 : i64, scratch_operands = 0 : i64, tpu.core_type = #tpu.core_type<tc>, window_params = [{pipeline_mode = #tpu.pipeline_mode<synchronous>, transform_indices = @transform_0, window_bounds = array<i64: 64, 128>}, {transform_indices = @transform_1, window_bounds = array<i64: 64, 64>}, {transform_indices = @transform_2, window_bounds = array<i64: 64, 128>}]} {
    %c0 = arith.constant 0 : index
    %c0_0 = arith.constant 0 : index
    %0 = vector.load %arg2[%c0, %c0_0] : memref<64x64xbf16, #tpu.memory_space<vmem>>, vector<64x64xbf16>
    %c0_1 = arith.constant 0 : index
    %c0_2 = arith.constant 0 : index
    %1 = vector.load %arg1[%c0_1, %c0_2] : memref<64x128xbf16, #tpu.memory_space<vmem>>, vector<64x128xbf16>
    %cst = arith.constant dense<0.000000e+00> : vector<64x128xf32>
    %2 = tpu.matmul %0, %1, %cst {dimension_numbers = #tpu.dot_dimension_numbers<[1], [0], [0], [1], [0, 0, 1, 1], [], []>} : vector<64x64xbf16>, vector<64x128xbf16>, vector<64x128xf32> -> vector<64x128xf32>
    %c0_3 = arith.constant 0 : index
    %c0_4 = arith.constant 0 : index
    %3 = vector.load %arg3[%c0_3, %c0_4] : memref<64x128xf32, #tpu.memory_space<vmem>>, vector<64x128xf32>
    tpu.vector_store %arg3[%c0_3, %c0_4], %2 {strides = array<i32>} : memref<64x128xf32, #tpu.memory_space<vmem>>, vector<64x128xf32>,
    return
  }
  func.func @transform_0(%arg0: i32) -> (i32, i32) {
    %c0_i32 = arith.constant 0 : i32
    %c0_i32_0 = arith.constant 0 : i32
    %c0_i32_1 = arith.constant 0 : i32
    return %c0_i32, %c0_i32_0 : i32, i32
  }
  func.func @transform_1(%arg0: i32) -> (i32, i32) {
    %c0_i32 = arith.constant 0 : i32
    %c0_i32_0 = arith.constant 0 : i32
    return %arg0, %c0_i32 : i32, i32
  }
  func.func @transform_2(%arg0: i32) -> (i32, i32) {
    %c0_i32 = arith.constant 0 : i32
    %c0_i32_0 = arith.constant 0 : i32
    return %arg0, %c0_i32 : i32, i32
  }
}

</mosaic_0001>

<llo_original>
// kernel: hgnn_forward.3
$region0: #{hgnn_forward.3}
  #allocation0 [shape = 'u32[]', space=smem, size = 0x4, offset = 0x4, fixed_abs, tag = 'smem constant byte address 0x4 - core index']
  #allocation1 [shape = 'u32[72,128]{1,0:T(1,128)}', space=vmem, size = 0x9000, scoped, tag = 'internal scratch']
  %s0 = inlined_call_operand.vmem [shape: bf16[64,128], index: 0, kind: input, shape index: {}]
  %s1 = inlined_call_operand.vmem [shape: bf16[64,64], index: 1, kind: input, shape index: {}]
  %s2 = inlined_call_operand.vmem [shape: f32[64,128], index: 2, kind: output, shape index: {}]
  %s3 = sld [smem:[#allocation0]]
  $region18: #{hgnn_forward.3} parent=0
    _
  %s5 = ssub.s32 1, %s3
  %s6 = scalar_select 0, %s5, %s3
  // Predicated region
  $region2: #{hgnn_forward.3} parent=0 // pred_check
    _
  $region3: #{hgnn_forward.3} parent=0 // pred_check_branch
    %8 = sbr.rel (0) target = $region5
  $region4: #{hgnn_forward.3} parent=0 // pred_region
    _
  $region5: #{hgnn_forward.3} parent=0 // pred_fallthru
    _
  // Predicated region
  $region6: #{hgnn_forward.3} parent=0 // pred_check
    _
  $region7: #{hgnn_forward.3} parent=0 // pred_check_branch
    %10 = sbr.rel (0) target = $region9
  $region8: #{hgnn_forward.3} parent=0 // pred_region
    _
  $region9: #{hgnn_forward.3} parent=0 // pred_fallthru
    _
  %v12 = vld [vmem:[%s1] sm:$0xf]
  %v13 = vld [vmem:[%s1 + $0x4] sm:$0xf]
  %v14 = vld [vmem:[%s1 + $0x8] sm:$0xf]
  %v15 = vld [vmem:[%s1 + $0xc] sm:$0xf]
  %v16 = vld [vmem:[%s1 + $0x10] sm:$0xf]
  %v17 = vld [vmem:[%s1 + $0x14] sm:$0xf]
  %v18 = vld [vmem:[%s1 + $0x18] sm:$0xf]
  %v19 = vld [vmem:[%s1 + $0x1c] sm:$0xf]
  %v20 = vld [vmem:[%s0] sm:$0xf]
  %v21 = vld [vmem:[%s0 + $0x4] sm:$0xf]
  %v22 = vld [vmem:[%s0 + $0x8] sm:$0xf]
  %v23 = vld [vmem:[%s0 + $0xc] sm:$0xf]
  %v24 = vld [vmem:[%s0 + $0x10] sm:$0xf]
  %v25 = vld [vmem:[%s0 + $0x14] sm:$0xf]
  %v26 = vld [vmem:[%s0 + $0x18] sm:$0xf]
  %v27 = vld [vmem:[%s0 + $0x1c] sm:$0xf]
  %v36 = vunpack.c.l.b16 %v12
  %v37 = vunpack.c.l.b16 %v13
  %v38 = vunpack.c.l.b16 %v14
  %v39 = vunpack.c.l.b16 %v15
  %v40 = vunpack.c.l.b16 %v16
  %v41 = vunpack.c.l.b16 %v17
  %v42 = vunpack.c.l.b16 %v18
  %v43 = vunpack.c.l.b16 %v19
  %v44 = vpack.c.b16 %v37, %v36
  %v45 = vpack.c.b16 %v39, %v38
  %v46 = vpack.c.b16 %v41, %v40
  %v47 = vpack.c.b16 %v43, %v42
  %v56 = vunpack.c.l.b16 %v20
  %v57 = vunpack.c.l.b16 %v21
  %v58 = vunpack.c.l.b16 %v22
  %v59 = vunpack.c.l.b16 %v23
  %v60 = vunpack.c.l.b16 %v24
  %v61 = vunpack.c.l.b16 %v25
  %v62 = vunpack.c.l.b16 %v26
  %v63 = vunpack.c.l.b16 %v27
  %v64 = vpack.c.b16 %v57, %v56
  %v65 = vpack.c.b16 %v59, %v58
  %v66 = vpack.c.b16 %v61, %v60
  %v67 = vpack.c.b16 %v63, %v62
  %vm72 = vcmask 523264
  %v74 = vsel %vm72, %v44, 0
  %v77 = vsel %vm72, %v45, 0
  %v80 = vsel %vm72, %v46, 0
  %v83 = vsel %vm72, %v47, 0
  %85 = vmatpush.bf16.msra.mxu0 0
  %86 = vmatpush.bf16.msra.mxu0 0
  %87 = vmatpush.bf16.msra.mxu0 0
  %88 = vmatpush.bf16.msra.mxu0 0
  %89 = vmatpush.bf16.msra.mxu0 %v67
  %90 = vmatpush.bf16.msra.mxu0 %v66
  %91 = vmatpush.bf16.msra.mxu0 %v65
  %92 = vmatpush.bf16.msra.mxu0 %v64
  %93 = vmatmul.bf16.gmra.mxu0 %v74
  %v94 = vpop.f32.mrf.mxu0
  %v95 = vadd.f32 0.0, %v94
  %v96 = vpop.f32.mrf.mxu0
  %v97 = vadd.f32 0.0, %v96
  %98 = vmatmul.bf16.gmra.mxu0 %v77
  %v99 = vpop.f32.mrf.mxu0
  %v100 = vadd.f32 0.0, %v99
  %v101 = vpop.f32.mrf.mxu0
  %v102 = vadd.f32 0.0, %v101
  %103 = vmatmul.bf16.gmra.mxu0 %v80
  %v104 = vpop.f32.mrf.mxu0
  %v105 = vadd.f32 0.0, %v104
  %v106 = vpop.f32.mrf.mxu0
  %v107 = vadd.f32 0.0, %v106
  %108 = vmatmul.bf16.gmra.mxu0 %v83
  %v109 = vpop.f32.mrf.mxu0
  %v110 = vadd.f32 0.0, %v109
  %v111 = vpop.f32.mrf.mxu0
  %v112 = vadd.f32 0.0, %v111
  %113 = vdwg.mxu0
  %114 = vst [vmem:[%s2] sm:$0xff] %v95
  %115 = vst [vmem:[%s2 + $0x8] sm:$0xff] %v97
  %116 = vst [vmem:[%s2 + $0x10] sm:$0xff] %v100
  %117 = vst [vmem:[%s2 + $0x18] sm:$0xff] %v102
  %118 = vst [vmem:[%s2 + $0x20] sm:$0xff] %v105
  %119 = vst [vmem:[%s2 + $0x28] sm:$0xff] %v107
  %120 = vst [vmem:[%s2 + $0x30] sm:$0xff] %v110
  %121 = vst [vmem:[%s2 + $0x38] sm:$0xff] %v112
  // Predicated region
  $region10: #{hgnn_forward.3} parent=0 // pred_check
    _
  $region11: #{hgnn_forward.3} parent=0 // pred_check_branch
    %123 = sbr.rel (0) target = $region13
  $region12: #{hgnn_forward.3} parent=0 // pred_region
    _
  $region13: #{hgnn_forward.3} parent=0 // pred_fallthru
    _
  // Predicated region
  $region14: #{hgnn_forward.3} parent=0 // pred_check
    _
  $region15: #{hgnn_forward.3} parent=0 // pred_check_branch
    %125 = sbr.rel (0) target = $region17
  $region16: #{hgnn_forward.3} parent=0 // pred_region
    _
  $region17: #{hgnn_forward.3} parent=0 // pred_fallthru
    _

// kernel: hgnn_forward.2
$region0: #{hgnn_forward.2}
  #allocation0 [shape = 'u32[]', space=smem, size = 0x4, offset = 0x4, fixed_abs, tag = 'smem constant byte address 0x4 - core index']
  #allocation1 [shape = 'u32[72,128]{1,0:T(1,128)}', space=vmem, size = 0x9000, scoped, tag = 'internal scratch']
  %s0 = inlined_call_operand.vmem [shape: bf16[64,128], index: 0, kind: input, shape index: {}]
  %s1 = inlined_call_operand.vmem [shape: bf16[64,64], index: 1, kind: input, shape index: {}]
  %s2 = inlined_call_operand.vmem [shape: f32[128,128], index: 2, kind: input, shape index: {}]
  %s3 = inlined_call_operand.vmem [shape: f32[1,128], index: 3, kind: input, shape index: {}]
  %s4 = inlined_call_operand.vmem [shape: f32[64,128], index: 4, kind: output, shape index: {0}]
  %s5 = inlined_call_operand.vmem [shape: bf16[64,128], index: 5, kind: output, shape index: {1}]
  %6 = xla_tuple %s4, %s5
  %s7 = sld [smem:[#allocation0]]
  $region34: #{hgnn_forward.2} parent=0
    _
  %s9 = ssub.s32 1, %s7
  %s10 = scalar_select 0, %s9, %s7
  // Predicated region
  $region2: #{hgnn_forward.2} parent=0 // pred_check
    _
  $region3: #{hgnn_forward.2} parent=0 // pred_check_branch
    %12 = sbr.rel (0) target = $region5
  $region4: #{hgnn_forward.2} parent=0 // pred_region
    _
  $region5: #{hgnn_forward.2} parent=0 // pred_fallthru
    _
  // Predicated region
  $region6: #{hgnn_forward.2} parent=0 // pred_check
    _
  $region7: #{hgnn_forward.2} parent=0 // pred_check_branch
    %14 = sbr.rel (0) target = $region9
  $region8: #{hgnn_forward.2} parent=0 // pred_region
    _
  $region9: #{hgnn_forward.2} parent=0 // pred_fallthru
    _
  // Predicated region
  $region10: #{hgnn_forward.2} parent=0 // pred_check
    _
  $region11: #{hgnn_forward.2} parent=0 // pred_check_branch
    %16 = sbr.rel (0) target = $region13
  $region12: #{hgnn_forward.2} parent=0 // pred_region
    _
  $region13: #{hgnn_forward.2} parent=0 // pred_fallthru
    _
  // Predicated region
  $region14: #{hgnn_forward.2} parent=0 // pred_check
    _
  $region15: #{hgnn_forward.2} parent=0 // pred_check_branch
    %18 = sbr.rel (0) target = $region17
  $region16: #{hgnn_forward.2} parent=0 // pred_region
    _
  $region17: #{hgnn_forward.2} parent=0 // pred_fallthru
    _
  %v20 = vld [vmem:[%s1] sm:$0xf]
  %v21 = vld [vmem:[%s1 + $0x4] sm:$0xf]
  %v22 = vld [vmem:[%s1 + $0x8] sm:$0xf]
  %v23 = vld [vmem:[%s1 + $0xc] sm:$0xf]
  %v24 = vld [vmem:[%s1 + $0x10] sm:$0xf]
  %v25 = vld [vmem:[%s1 + $0x14] sm:$0xf]
  %v26 = vld [vmem:[%s1 + $0x18] sm:$0xf]
  %v27 = vld [vmem:[%s1 + $0x1c] sm:$0xf]
  %v28 = vld [vmem:[%s0] sm:$0xf]
  %v29 = vld [vmem:[%s0 + $0x4] sm:$0xf]
  %v30 = vld [vmem:[%s0 + $0x8] sm:$0xf]
  %v31 = vld [vmem:[%s0 + $0xc] sm:$0xf]
  %v32 = vld [vmem:[%s0 + $0x10] sm:$0xf]
  %v33 = vld [vmem:[%s0 + $0x14] sm:$0xf]
  %v34 = vld [vmem:[%s0 + $0x18] sm:$0xf]
  %v35 = vld [vmem:[%s0 + $0x1c] sm:$0xf]
  %v44 = vunpack.c.l.b16 %v20
  %v45 = vunpack.c.l.b16 %v21
  %v46 = vunpack.c.l.b16 %v22
  %v47 = vunpack.c.l.b16 %v23
  %v48 = vunpack.c.l.b16 %v24
  %v49 = vunpack.c.l.b16 %v25
  %v50 = vunpack.c.l.b16 %v26
  %v51 = vunpack.c.l.b16 %v27
  %v52 = vpack.c.b16 %v45, %v44
  %v53 = vpack.c.b16 %v47, %v46
  %v54 = vpack.c.b16 %v49, %v48
  %v55 = vpack.c.b16 %v51, %v50
  %v64 = vunpack.c.l.b16 %v28
  %v65 = vunpack.c.l.b16 %v29
  %v66 = vunpack.c.l.b16 %v30
  %v67 = vunpack.c.l.b16 %v31
  %v68 = vunpack.c.l.b16 %v32
  %v69 = vunpack.c.l.b16 %v33
  %v70 = vunpack.c.l.b16 %v34
  %v71 = vunpack.c.l.b16 %v35
  %v72 = vpack.c.b16 %v65, %v64
  %v73 = vpack.c.b16 %v67, %v66
  %v74 = vpack.c.b16 %v69, %v68
  %v75 = vpack.c.b16 %v71, %v70
  %vm80 = vcmask 523264
  %v82 = vsel %vm80, %v52, 0
  %v85 = vsel %vm80, %v53, 0
  %v88 = vsel %vm80, %v54, 0
  %v91 = vsel %vm80, %v55, 0
  %93 = vmatpush.bf16.msra.mxu0 0
  %94 = vmatpush.bf16.msra.mxu0 0
  %95 = vmatpush.bf16.msra.mxu0 0
  %96 = vmatpush.bf16.msra.mxu0 0
  %97 = vmatpush.bf16.msra.mxu0 %v75
  %98 = vmatpush.bf16.msra.mxu0 %v74
  %99 = vmatpush.bf16.msra.mxu0 %v73
  %100 = vmatpush.bf16.msra.mxu0 %v72
  %101 = vmatmul.bf16.gmra.mxu0 %v82
  %v102 = vpop.f32.mrf.mxu0
  %v103 = vadd.f32 0.0, %v102
  %v104 = vpop.f32.mrf.mxu0
  %v105 = vadd.f32 0.0, %v104
  %106 = vmatmul.bf16.gmra.mxu0 %v85
  %v107 = vpop.f32.mrf.mxu0
  %v108 = vadd.f32 0.0, %v107
  %v109 = vpop.f32.mrf.mxu0
  %v110 = vadd.f32 0.0, %v109
  %111 = vmatmul.bf16.gmra.mxu0 %v88
  %v112 = vpop.f32.mrf.mxu0
  %v113 = vadd.f32 0.0, %v112
  %v114 = vpop.f32.mrf.mxu0
  %v115 = vadd.f32 0.0, %v114
  %116 = vmatmul.bf16.gmra.mxu0 %v91
  %v117 = vpop.f32.mrf.mxu0
  %v118 = vadd.f32 0.0, %v117
  %v119 = vpop.f32.mrf.mxu0
  %v120 = vadd.f32 0.0, %v119
  %121 = vdwg.mxu0
  %v122 = vmax.f32 %v103, 0.0
  %v123 = vmax.f32 %v105, 0.0
  %v124 = vmax.f32 %v108, 0.0
  %v125 = vmax.f32 %v110, 0.0
  %v126 = vmax.f32 %v113, 0.0
  %v127 = vmax.f32 %v115, 0.0
  %v128 = vmax.f32 %v118, 0.0
  %v129 = vmax.f32 %v120, 0.0
  %130 = vrot.lane.b32.xlu0 %v122, 98
  %v131 = vpop.permute.xlu0 %130
  %132 = vrot.lane.b32.xlu0 %v123, 98
  %v133 = vpop.permute.xlu0 %132
  %134 = vrot.lane.b32.xlu0 %v124, 98
  %v135 = vpop.permute.xlu0 %134
  %136 = vrot.lane.b32.xlu0 %v125, 98
  %v137 = vpop.permute.xlu0 %136
  %138 = vrot.lane.b32.xlu0 %v126, 98
  %v139 = vpop.permute.xlu0 %138
  %140 = vrot.lane.b32.xlu0 %v127, 98
  %v141 = vpop.permute.xlu0 %140
  %142 = vrot.lane.b32.xlu0 %v128, 98
  %v143 = vpop.permute.xlu0 %142
  %144 = vrot.lane.b32.xlu0 %v129, 98
  %v145 = vpop.permute.xlu0 %144
  %146 = vrot.lane.b32.xlu0 %v122, 64
  %v147 = vpop.permute.xlu0 %146
  %148 = vrot.lane.b32.xlu0 %v123, 64
  %v149 = vpop.permute.xlu0 %148
  %150 = vrot.lane.b32.xlu0 %v124, 64
  %v151 = vpop.permute.xlu0 %150
  %152 = vrot.lane.b32.xlu0 %v125, 64
  %v153 = vpop.permute.xlu0 %152
  %154 = vrot.lane.b32.xlu0 %v126, 64
  %v155 = vpop.permute.xlu0 %154
  %156 = vrot.lane.b32.xlu0 %v127, 64
  %v157 = vpop.permute.xlu0 %156
  %158 = vrot.lane.b32.xlu0 %v128, 64
  %v159 = vpop.permute.xlu0 %158
  %160 = vrot.lane.b32.xlu0 %v129, 64
  %v161 = vpop.permute.xlu0 %160
  %v162 = vlaneseq
  %v163 = vand.u32 %v162, 127
  %vm164 = vcmp.lt.s32.totalorder %v163, 30
  %v165 = vmul.f32 %v122, %v131
  %v166 = vmul.f32 %v123, %v133
  %v167 = vmul.f32 %v124, %v135
  %v168 = vmul.f32 %v125, %v137
  %v169 = vmul.f32 %v126, %v139
  %v170 = vmul.f32 %v127, %v141
  %v171 = vmul.f32 %v128, %v143
  %v172 = vmul.f32 %v129, %v145
  %v173 = vadd.f32 %v165, %v147
  %v174 = vadd.f32 %v166, %v149
  %v175 = vadd.f32 %v167, %v151
  %v176 = vadd.f32 %v168, %v153
  %v177 = vadd.f32 %v169, %v155
  %v178 = vadd.f32 %v170, %v157
  %v179 = vadd.f32 %v171, %v159
  %v180 = vadd.f32 %v172, %v161
  %v181 = vsel %vm164, %v173, 0.0
  %v182 = vsel %vm164, %v174, 0.0
  %v183 = vsel %vm164, %v175, 0.0
  %v184 = vsel %vm164, %v176, 0.0
  %v185 = vsel %vm164, %v177, 0.0
  %v186 = vsel %vm164, %v178, 0.0
  %v187 = vsel %vm164, %v179, 0.0
  %v188 = vsel %vm164, %v180, 0.0
  %189 = vst [vmem:[%s4] sm:$0xff] %v181
  %190 = vst [vmem:[%s4 + $0x8] sm:$0xff] %v182
  %191 = vst [vmem:[%s4 + $0x10] sm:$0xff] %v183
  %192 = vst [vmem:[%s4 + $0x18] sm:$0xff] %v184
  %193 = vst [vmem:[%s4 + $0x20] sm:$0xff] %v185
  %194 = vst [vmem:[%s4 + $0x28] sm:$0xff] %v186
  %195 = vst [vmem:[%s4 + $0x30] sm:$0xff] %v187
  %196 = vst [vmem:[%s4 + $0x38] sm:$0xff] %v188
  %v197 = vld [vmem:[%s2] sm:$0xff]
  %v198 = vld [vmem:[%s2 + $0x8] sm:$0xff]
  %v199 = vld [vmem:[%s2 + $0x10] sm:$0xff]
  %v200 = vld [vmem:[%s2 + $0x18] sm:$0xff]
  %v201 = vld [vmem:[%s2 + $0x20] sm:$0xff]
  %v202 = vld [vmem:[%s2 + $0x28] sm:$0xff]
  %v203 = vld [vmem:[%s2 + $0x30] sm:$0xff]
  %v204 = vld [vmem:[%s2 + $0x38] sm:$0xff]
  %v205 = vld [vmem:[%s2 + $0x40] sm:$0xff]
  %v206 = vld [vmem:[%s2 + $0x48] sm:$0xff]
  %v207 = vld [vmem:[%s2 + $0x50] sm:$0xff]
  %v208 = vld [vmem:[%s2 + $0x58] sm:$0xff]
  %v209 = vld [vmem:[%s2 + $0x60] sm:$0xff]
  %v210 = vld [vmem:[%s2 + $0x68] sm:$0xff]
  %v211 = vld [vmem:[%s2 + $0x70] sm:$0xff]
  %v212 = vld [vmem:[%s2 + $0x78] sm:$0xff]
  %v213 = vld [vmem:[%s3] sm:$0x1]
  %v215 = vperm.slane %v213, 0
  %217 = vmatpush.msra.mxu0 %v212
  %218 = vmatpush.msra.mxu0 %v211
  %219 = vmatpush.msra.mxu0 %v210
  %220 = vmatpush.msra.mxu0 %v209
  %221 = vmatpush.msra.mxu0 %v208
  %222 = vmatpush.msra.mxu0 %v207
  %223 = vmatpush.msra.mxu0 %v206
  %224 = vmatpush.msra.mxu0 %v205
  %225 = vmatpush.msra.mxu0 %v204
  %226 = vmatpush.msra.mxu0 %v203
  %227 = vmatpush.msra.mxu0 %v202
  %228 = vmatpush.msra.mxu0 %v201
  %229 = vmatpush.msra.mxu0 %v200
  %230 = vmatpush.msra.mxu0 %v199
  %231 = vmatpush.msra.mxu0 %v198
  %232 = vmatpush.msra.mxu0 %v197
  %233 = vmatmul.f32.gmra.mxu0 %v181
  %v234 = vpop.f32.mrf.mxu0
  %v235 = vadd.f32 %v215, %v234
  %236 = vmatmul.f32.gmra.mxu0 %v182
  %v237 = vpop.f32.mrf.mxu0
  %v238 = vadd.f32 %v215, %v237
  %239 = vmatmul.f32.gmra.mxu0 %v183
  %v240 = vpop.f32.mrf.mxu0
  %v241 = vadd.f32 %v215, %v240
  %242 = vmatmul.f32.gmra.mxu0 %v184
  %v243 = vpop.f32.mrf.mxu0
  %v244 = vadd.f32 %v215, %v243
  %245 = vmatmul.f32.gmra.mxu0 %v185
  %v246 = vpop.f32.mrf.mxu0
  %v247 = vadd.f32 %v215, %v246
  %248 = vmatmul.f32.gmra.mxu0 %v186
  %v249 = vpop.f32.mrf.mxu0
  %v250 = vadd.f32 %v215, %v249
  %251 = vmatmul.f32.gmra.mxu0 %v187
  %v252 = vpop.f32.mrf.mxu0
  %v253 = vadd.f32 %v215, %v252
  %254 = vmatmul.f32.gmra.mxu0 %v188
  %v255 = vpop.f32.mrf.mxu0
  %v256 = vadd.f32 %v215, %v255
  %257 = vdwg.mxu0
  %v258 = vpack.c.bf16 %v235, %v235
  %v259 = vpack.c.bf16 %v238, %v238
  %v260 = vpack.c.bf16 %v241, %v241
  %v261 = vpack.c.bf16 %v244, %v244
  %v262 = vpack.c.bf16 %v247, %v247
  %v263 = vpack.c.bf16 %v250, %v250
  %v264 = vpack.c.bf16 %v253, %v253
  %v265 = vpack.c.bf16 %v256, %v256
  %266 = vst [vmem:[%s5] sm:$0xf] %v258
  %267 = vst [vmem:[%s5 + $0x4] sm:$0xf] %v259
  %268 = vst [vmem:[%s5 + $0x8] sm:$0xf] %v260
  %269 = vst [vmem:[%s5 + $0xc] sm:$0xf] %v261
  %270 = vst [vmem:[%s5 + $0x10] sm:$0xf] %v262
  %271 = vst [vmem:[%s5 + $0x14] sm:$0xf] %v263
  %272 = vst [vmem:[%s5 + $0x18] sm:$0xf] %v264
  %273 = vst [vmem:[%s5 + $0x1c] sm:$0xf] %v265
  // Predicated region
  $region18: #{hgnn_forward.2} parent=0 // pred_check
    _
  $region19: #{hgnn_forward.2} parent=0 // pred_check_branch
    %275 = sbr.rel (0) target = $region21
  $region20: #{hgnn_forward.2} parent=0 // pred_region
    _
  $region21: #{hgnn_forward.2} parent=0 // pred_fallthru
    _
  // Predicated region
  $region22: #{hgnn_forward.2} parent=0 // pred_check
    _
  $region23: #{hgnn_forward.2} parent=0 // pred_check_branch
    %277 = sbr.rel (0) target = $region25
  $region24: #{hgnn_forward.2} parent=0 // pred_region
    _
  $region25: #{hgnn_forward.2} parent=0 // pred_fallthru
    _
  // Predicated region
  $region26: #{hgnn_forward.2} parent=0 // pred_check
    _
  $region27: #{hgnn_forward.2} parent=0 // pred_check_branch
    %279 = sbr.rel (0) target = $region29
  $region28: #{hgnn_forward.2} parent=0 // pred_region
    _
  $region29: #{hgnn_forward.2} parent=0 // pred_fallthru
    _
  // Predicated region
  $region30: #{hgnn_forward.2} parent=0 // pred_check
    _
  $region31: #{hgnn_forward.2} parent=0 // pred_check_branch
    %281 = sbr.rel (0) target = $region33
  $region32: #{hgnn_forward.2} parent=0 // pred_region
    _
  $region33: #{hgnn_forward.2} parent=0 // pred_fallthru
    _

</llo_original>
